<compile_context>
chip_gen: v7x
topology: tpu7x:2x2x1
jax: 0.10.0
libtpu: 0.0.40
codegen_flags: <defaults>
</compile_context>

<pallas_src>
import functools

import numpy as np
import jax
import jax.numpy as jnp
from jax import lax
from jax.experimental import pallas as pl
from jax.experimental.pallas import tpu as pltpu


def _round_up(v: int, m: int) -> int:
    return -(-v // m) * m


_BLOCK_ELEMS_CACHE = None


def _block_elems() -> int:
    """Per-buffer block budget in elements (f32 worst case), per TPU generation."""
    global _BLOCK_ELEMS_CACHE
    if _BLOCK_ELEMS_CACHE is None:
        try:
            kind = jax.devices()[0].device_kind.lower()
        except Exception:
            kind = ""
        if ("v6" in kind) or ("trillium" in kind) or ("v7" in kind):
            # 4 MiB f32/buffer -> ~16 MiB in flight (in+out double-buffered),
            # fits the 32 MiB scoped-VMEM default on v6e and v7x.
            _BLOCK_ELEMS_CACHE = 1024 * 1024
        else:
            # v5e (16 MiB scoped default) / unknown backends: 2 MiB/buffer.
            _BLOCK_ELEMS_CACHE = 512 * 1024
    return _BLOCK_ELEMS_CACHE


def _fmix32(h):
    """murmur3 finalizer: full-avalanche 32-bit mixer (VPU-only: mul/xor/shift)."""
    h = h ^ (h >> 16)
    h = h * np.uint32(0x85EBCA6B)
    h = h ^ (h >> 13)
    h = h * np.uint32(0xC2B2AE35)
    h = h ^ (h >> 16)
    return h


def _gaussian_noise_kernel(seed_ref, x_ref, o_ref, *, mean, std, block_rows, lanes):
    # Counter-based stateless PRNG keyed on (seed, global flat element index):
    # deterministic, independent of tiling / TensorCore assignment, and needs
    # no Mosaic-only PRNG primitives.
    row = lax.broadcasted_iota(jnp.int32, x_ref.shape, 0)
    col = lax.broadcasted_iota(jnp.int32, x_ref.shape, 1)
    row0 = pl.program_id(0) * block_rows
    idx = ((row0 + row) * lanes + col).astype(jnp.uint32)

    seed_u = seed_ref[0].astype(jnp.uint32)
    # Large-odd-constant seed whitening -> no correlation between nearby seeds.
    k1 = seed_u * np.uint32(0x9E3779B1) ^ np.uint32(0x85EBCA77)
    k2 = seed_u * np.uint32(0xC2B2AE3D) ^ np.uint32(0x27D4EB2F)
    h1 = _fmix32(idx ^ k1)
    h2 = _fmix32(h1 ^ k2)

    # 24-bit uniforms (route through int32 so the int->float convert is sitofp).
    u1 = ((h1 >> 8).astype(jnp.int32).astype(jnp.float32) + 0.5) * np.float32(2.0 ** -24)  # (0,1)
    u2 = (h2 >> 8).astype(jnp.int32).astype(jnp.float32) * np.float32(2.0 ** -24)          # [0,1)

    # Box-Muller: exact N(0,1). ~3 EUP transcendentals/element (log, sqrt, cos).
    r = jnp.sqrt(np.float32(-2.0) * jnp.log(u1))
    z = r * jnp.cos(np.float32(2.0 * np.pi) * u2)

    x = x_ref[...].astype(jnp.float32)
    o_ref[...] = (x + (np.float32(mean) + np.float32(std) * z)).astype(o_ref.dtype)


@functools.partial(jax.jit, static_argnames=("mean", "std"))
def _gaussian_noise_jit(x, seed, *, mean, std):
    orig_shape = x.shape
    orig_dtype = x.dtype
    total = x.size

    # Lane-dense layout: pick the widest lane count dividing `total`
    # (fast path: free reshapes only, no pad, no final slice).
    lanes = None
    for cand in (512, 256, 128):
        if total % cand == 0:
            lanes = cand
            break
    pad = 0
    if lanes is None:
        lanes = 128
        pad = _round_up(total, lanes) - total  # < 128 padded elements, one small pad op

    flat = x.reshape(-1)
    if pad:
        flat = jnp.pad(flat, (0, pad))
    rows = (total + pad) // lanes

    # Big blocks amortize the ~0.35us/grid-step overhead; ragged last block is
    # masked by Pallas (no row padding to block multiples).
    cap = max(32, _block_elems() // lanes)  # multiple of 32: f32/bf16/int8 sublane safe
    block_rows = rows if rows <= cap else cap
    grid = (pl.cdiv(rows, block_rows),)

    x2d = flat.reshape(rows, lanes)
    seed_arr = jnp.reshape(seed, (1,)).astype(jnp.int32)
    kernel = functools.partial(
        _gaussian_noise_kernel,
        mean=float(mean), std=float(std), block_rows=block_rows, lanes=lanes)

    itemsize = x.dtype.itemsize
    out2d = pl.pallas_call(
        kernel,
        out_shape=jax.ShapeDtypeStruct((rows, lanes), orig_dtype),
        grid_spec=pltpu.PrefetchScalarGridSpec(
            num_scalar_prefetch=1,
            grid=grid,
            # index_maps receive the scalar-prefetch ref as a trailing positional arg.
            in_specs=[pl.BlockSpec((block_rows, lanes), lambda i, seed_ref: (i, 0))],
            out_specs=pl.BlockSpec((block_rows, lanes), lambda i, seed_ref: (i, 0)),
        ),
        compiler_params=pltpu.CompilerParams(
            # On v7x this axis could be pltpu.CORE_PARALLEL to explicitly split
            # across both TensorCores; "parallel" kept for portability (noise is
            # keyed by global element index, so results are identical either way).
            dimension_semantics=("parallel",),
        ),
        cost_estimate=pl.CostEstimate(
            flops=30 * int(total),
            transcendentals=3 * int(total),
            bytes_accessed=2 * int(total) * int(itemsize),
        ),
    )(seed_arr, x2d)

    out = out2d.reshape(-1)
    if pad:
        out = out[:total]
    return out.reshape(orig_shape)


def gaussian_noise(x: jax.Array, seed: int, mean: float, std: float) -> jax.Array:
    """Elementwise x + N(mean, std) via a Pallas TPU kernel. Any shape, float dtype."""
    return _gaussian_noise_jit(
        x, jnp.asarray(seed, dtype=jnp.int32), mean=float(mean), std=float(std))


class GaussianNoise:
    """JAX/Pallas analogue of the PyTorch GaussianNoise module.

    With probability `p` (one host-side draw per call, mirroring
    `torch.rand(1) < p`), additive N(mean, std) noise is applied to every
    array in `inputs` (and `outputs`, if given).
    """

    # TODO(synk): the original calls input_('gaussian_noise', mean=..., std=...) on
    # project-specific tensor wrappers; here the transform is applied directly to
    # plain jax arrays.
    # TODO(synk): dicts of many tiny tensors could be batched into one kernel launch
    # to further reduce dispatch overhead.

    def __init__(self, mean, std, p=0.5, seed=0):
        self.mean = float(mean)
        self.std = float(std)
        self.p = float(p)
        self._rng = np.random.default_rng(seed)  # host-side: no device syncs

    def _apply_to_dict(self, d):
        out = {}
        for name, arr in d.items():
            seed = int(self._rng.integers(0, 2**31 - 1))
            out[name] = gaussian_noise(arr, seed, self.mean, self.std)
        return out

    def __call__(self, inputs, outputs=None):
        # Host-side Bernoulli gate (one draw per call), matching torch.rand(1) < p.
        if self._rng.random() < self.p:
            inputs = self._apply_to_dict(inputs)
            if outputs is not None:
                outputs = self._apply_to_dict(outputs)
        return (inputs, outputs) if outputs is not None else inputs


if __name__ == "__main__":
    key = jax.random.PRNGKey(0)
    k_a, k_b, k_c = jax.random.split(key, 3)

    # Small NCHW tensors consistent with the data-transform use case.
    img_in = jax.random.normal(k_a, (2, 4, 16, 16), dtype=jnp.float32)   # 2048 elems: lane fast path
    img_out = jax.random.normal(k_b, (2, 4, 16, 16), dtype=jnp.float32)
    odd = jax.random.normal(k_c, (3, 5, 7), dtype=jnp.float32)           # 105 elems: pad path

    mean, std = 0.5, 0.1
    module = GaussianNoise(mean=mean, std=std, p=1.0, seed=0)  # p=1 -> noise path always taken
    new_in, new_out = module({"camera": img_in, "odd": odd}, {"target": img_out})
    jax.block_until_ready(new_in["camera"])
    jax.block_until_ready(new_in["odd"])
    jax.block_until_ready(new_out["target"])

    a, c = new_in["camera"], new_in["odd"]
    b = new_out["target"]
    assert a.shape == img_in.shape and a.dtype == img_in.dtype
    assert b.shape == img_out.shape and b.dtype == img_out.dtype
    assert c.shape == odd.shape and c.dtype == odd.dtype

    noise_a = np.asarray(a - img_in).ravel()
    noise_b = np.asarray(b - img_out).ravel()
    noise_c = np.asarray(c - odd).ravel()
    for nz, tol in ((noise_a, 0.03), (noise_b, 0.03), (noise_c, 0.06)):
        assert np.isfinite(nz).all()
        assert abs(float(nz.mean()) - mean) < tol, (float(nz.mean()), mean, tol)
        assert abs(float(nz.std()) - std) < tol, (float(nz.std()), std, tol)

    # Different arrays get independent noise streams (different per-array seeds).
    assert not np.allclose(noise_a, noise_b)

    # Determinism: same seed -> identical noise.
    r1 = gaussian_noise(img_in, 1234, mean, std)
    r2 = gaussian_noise(img_in, 1234, mean, std)
    assert bool(jnp.array_equal(r1, r2))

    # p=0 path: dicts pass through untouched.
    passthrough = GaussianNoise(mean=mean, std=std, p=0.0, seed=3)({"camera": img_in})
    assert bool(jnp.array_equal(passthrough["camera"], img_in))

    print("KERNEL_OK")
</pallas_src>

<mosaic_0001>
module attributes {stable_mosaic.version = 11 : i64} {
  func.func @_gaussian_noise_kernel(%arg0: i32, %arg1: memref<1xi32, #tpu.memory_space<smem>>, %arg2: memref<4x512xf32, #tpu.memory_space<vmem>>, %arg3: memref<4x512xf32, #tpu.memory_space<vmem>>) attributes {dimension_semantics = [#tpu.dimension_semantics<parallel>], iteration_bounds = array<i64: 1>, scalar_prefetch = 1 : i64, scratch_operands = 0 : i64, tpu.core_type = #tpu.core_type<tc>, window_params = [{transform_indices = @transform_0, window_bounds = array<i64: 4, 512>}, {transform_indices = @transform_1, window_bounds = array<i64: 4, 512>}]} {
    %0 = tpu.iota {dimensions = array<i32: 0>} : vector<4x512xi32>
    %1 = tpu.iota {dimensions = array<i32: 1>} : vector<4x512xi32>
    %c4_i32 = arith.constant 4 : i32
    %2 = arith.muli %arg0, %c4_i32 : i32
    %3 = vector.broadcast %2 : i32 to vector<4x512xi32>
    %4 = arith.addi %3, %0 : vector<4x512xi32>
    %c512_i32 = arith.constant 512 : i32
    %5 = vector.broadcast %c512_i32 : i32 to vector<4x512xi32>
    %6 = arith.muli %4, %5 : vector<4x512xi32>
    %7 = arith.addi %6, %1 : vector<4x512xi32>
    %c0 = arith.constant 0 : index
    %8 = memref.load %arg1[%c0] : memref<1xi32, #tpu.memory_space<smem>>
    %c-1640531535_i32 = arith.constant -1640531535 : i32
    %9 = arith.muli %8, %c-1640531535_i32 : i32
    %c-2048144777_i32 = arith.constant -2048144777 : i32
    %10 = arith.xori %9, %c-2048144777_i32 : i32
    %c-1028477379_i32 = arith.constant -1028477379 : i32
    %11 = arith.muli %8, %c-1028477379_i32 : i32
    %c668265263_i32 = arith.constant 668265263 : i32
    %12 = arith.xori %11, %c668265263_i32 : i32
    %13 = vector.broadcast %10 : i32 to vector<4x512xi32>
    %14 = arith.xori %7, %13 : vector<4x512xi32>
    %c16_i32 = arith.constant 16 : i32
    %15 = vector.broadcast %c16_i32 : i32 to vector<4x512xi32>
    %16 = arith.shrui %14, %15 : vector<4x512xi32>
    %17 = arith.xori %14, %16 : vector<4x512xi32>
    %c-2048144789_i32 = arith.constant -2048144789 : i32
    %18 = vector.broadcast %c-2048144789_i32 : i32 to vector<4x512xi32>
    %19 = arith.muli %17, %18 : vector<4x512xi32>
    %c13_i32 = arith.constant 13 : i32
    %20 = vector.broadcast %c13_i32 : i32 to vector<4x512xi32>
    %21 = arith.shrui %19, %20 : vector<4x512xi32>
    %22 = arith.xori %19, %21 : vector<4x512xi32>
    %c-1028477387_i32 = arith.constant -1028477387 : i32
    %23 = vector.broadcast %c-1028477387_i32 : i32 to vector<4x512xi32>
    %24 = arith.muli %22, %23 : vector<4x512xi32>
    %c16_i32_0 = arith.constant 16 : i32
    %25 = vector.broadcast %c16_i32_0 : i32 to vector<4x512xi32>
    %26 = arith.shrui %24, %25 : vector<4x512xi32>
    %27 = arith.xori %24, %26 : vector<4x512xi32>
    %28 = vector.broadcast %12 : i32 to vector<4x512xi32>
    %29 = arith.xori %27, %28 : vector<4x512xi32>
    %c16_i32_1 = arith.constant 16 : i32
    %30 = vector.broadcast %c16_i32_1 : i32 to vector<4x512xi32>
    %31 = arith.shrui %29, %30 : vector<4x512xi32>
    %32 = arith.xori %29, %31 : vector<4x512xi32>
    %c-2048144789_i32_2 = arith.constant -2048144789 : i32
    %33 = vector.broadcast %c-2048144789_i32_2 : i32 to vector<4x512xi32>
    %34 = arith.muli %32, %33 : vector<4x512xi32>
    %c13_i32_3 = arith.constant 13 : i32
    %35 = vector.broadcast %c13_i32_3 : i32 to vector<4x512xi32>
    %36 = arith.shrui %34, %35 : vector<4x512xi32>
    %37 = arith.xori %34, %36 : vector<4x512xi32>
    %c-1028477387_i32_4 = arith.constant -1028477387 : i32
    %38 = vector.broadcast %c-1028477387_i32_4 : i32 to vector<4x512xi32>
    %39 = arith.muli %37, %38 : vector<4x512xi32>
    %c16_i32_5 = arith.constant 16 : i32
    %40 = vector.broadcast %c16_i32_5 : i32 to vector<4x512xi32>
    %41 = arith.shrui %39, %40 : vector<4x512xi32>
    %42 = arith.xori %39, %41 : vector<4x512xi32>
    %c8_i32 = arith.constant 8 : i32
    %43 = vector.broadcast %c8_i32 : i32 to vector<4x512xi32>
    %44 = arith.shrui %27, %43 : vector<4x512xi32>
    %45 = arith.sitofp %44 : vector<4x512xi32> to vector<4x512xf32>
    %cst = arith.constant 5.000000e-01 : f32
    %46 = vector.broadcast %cst : f32 to vector<4x512xf32>
    %47 = arith.addf %45, %46 : vector<4x512xf32>
    %cst_6 = arith.constant 5.96046448E-8 : f32
    %48 = vector.broadcast %cst_6 : f32 to vector<4x512xf32>
    %49 = arith.mulf %47, %48 : vector<4x512xf32>
    %c8_i32_7 = arith.constant 8 : i32
    %50 = vector.broadcast %c8_i32_7 : i32 to vector<4x512xi32>
    %51 = arith.shrui %42, %50 : vector<4x512xi32>
    %52 = arith.sitofp %51 : vector<4x512xi32> to vector<4x512xf32>
    %cst_8 = arith.constant 5.96046448E-8 : f32
    %53 = vector.broadcast %cst_8 : f32 to vector<4x512xf32>
    %54 = arith.mulf %52, %53 : vector<4x512xf32>
    %55 = math.log %49 : vector<4x512xf32>
    %cst_9 = arith.constant -2.000000e+00 : f32
    %56 = vector.broadcast %cst_9 : f32 to vector<4x512xf32>
    %57 = arith.mulf %56, %55 : vector<4x512xf32>
    %58 = math.sqrt %57 : vector<4x512xf32>
    %cst_10 = arith.constant 6.28318548 : f32
    %59 = vector.broadcast %cst_10 : f32 to vector<4x512xf32>
    %60 = arith.mulf %59, %54 : vector<4x512xf32>
    %61 = math.cos %60 : vector<4x512xf32>
    %62 = arith.mulf %58, %61 : vector<4x512xf32>
    %c0_11 = arith.constant 0 : index
    %c0_12 = arith.constant 0 : index
    %63 = vector.load %arg2[%c0_11, %c0_12] : memref<4x512xf32, #tpu.memory_space<vmem>>, vector<4x512xf32>
    %cst_13 = arith.constant 1.000000e-01 : f32
    %64 = vector.broadcast %cst_13 : f32 to vector<4x512xf32>
    %65 = arith.mulf %64, %62 : vector<4x512xf32>
    %cst_14 = arith.constant 5.000000e-01 : f32
    %66 = vector.broadcast %cst_14 : f32 to vector<4x512xf32>
    %67 = arith.addf %66, %65 : vector<4x512xf32>
    %68 = arith.addf %63, %67 : vector<4x512xf32>
    %c0_15 = arith.constant 0 : index
    %c0_16 = arith.constant 0 : index
    %69 = vector.load %arg3[%c0_15, %c0_16] : memref<4x512xf32, #tpu.memory_space<vmem>>, vector<4x512xf32>
    tpu.vector_store %arg3[%c0_15, %c0_16], %68 {strides = array<i32>} : memref<4x512xf32, #tpu.memory_space<vmem>>, vector<4x512xf32>,
    return
  }
  func.func @transform_0(%arg0: i32, %arg1: memref<1xi32, #tpu.memory_space<smem>>) -> (i32, i32) {
    %c0_i32 = arith.constant 0 : i32
    %c0_i32_0 = arith.constant 0 : i32
    return %arg0, %c0_i32 : i32, i32
  }
  func.func @transform_1(%arg0: i32, %arg1: memref<1xi32, #tpu.memory_space<smem>>) -> (i32, i32) {
    %c0_i32 = arith.constant 0 : i32
    %c0_i32_0 = arith.constant 0 : i32
    return %arg0, %c0_i32 : i32, i32
  }
}

</mosaic_0001>

<llo_original>
// kernel: _gaussian_noise_jit.1
$region0: #{_gaussian_noise_jit.1}
  #allocation0 [shape = 'u32[]', space=smem, size = 0x4, offset = 0x4, fixed_abs, tag = 'smem constant byte address 0x4 - core index']
  #allocation1 [shape = 'u32[144,128]{1,0:T(1,128)}', space=vmem, size = 0x12000, scoped, tag = 'internal scratch']
  #allocation2 [shape = 's32[1]{0}', space=sflag, size = 0x4, scoped, tag = 'scoped memory for _gaussian_noise_jit.1']
  #allocation3 [shape = 's32[1]{0:T(128)S(6)}', space=smem, size = 0x200, scoped, tag = 'prefetched SMEM operand 0']
  %s0 = inlined_call_operand.<no memory space> [shape: s32[1], index: 0, kind: input, shape index: {}]
  %s1 = inlined_call_operand.vmem [shape: f32[4,512], index: 1, kind: input, shape index: {}]
  %s2 = inlined_call_operand.vmem [shape: f32[4,512], index: 2, kind: output, shape index: {}]
  %s3 = sld [smem:[#allocation0]]
  $region14: #{_gaussian_noise_jit.1} parent=0
    _
  %s5 = ssub.s32 1, %s3
  %s6 = scalar_select 0, %s5, %s3
  %7 = sst [smem:[#allocation3]] %s0
  // Predicated region
  $region2: #{_gaussian_noise_jit.1} parent=0 // pred_check
    _
  $region3: #{_gaussian_noise_jit.1} parent=0 // pred_check_branch
    %9 = sbr.rel (0) target = $region5
  $region4: #{_gaussian_noise_jit.1} parent=0 // pred_region
    _
  $region5: #{_gaussian_noise_jit.1} parent=0 // pred_fallthru
    _
  %v10 = vlaneseq
  %v11 = vshrl.u32 %v10, 7
  %v12 = vlaneseq
  %v13 = vand.u32 %v12, 127
  %v14 = vadd.s32 %v13, 128
  %v15 = vadd.s32 %v13, 256
  %v16 = vadd.s32 %v13, 384
  %s17 = smul.u32 0, 4
  %v18 = vstv %s17
  %v19 = vadd.s32 %v18, %v11
  %v20 = vmul.u32 %v19, 512
  %v21 = vadd.s32 %v20, %v13
  %v22 = vadd.s32 %v20, %v14
  %v23 = vadd.s32 %v20, %v15
  %v24 = vadd.s32 %v20, %v16
  %s25 = sld [smem:[#allocation3]]
  %s26 = smul.u32 %s25, 2654435761
  %s27 = sxor.u32 %s26, 2246822519
  %s28 = smul.u32 %s25, 3266489917
  %s29 = sxor.u32 %s28, 668265263
  %v30 = vstv %s27
  %v31 = vxor.u32 %v21, %v30
  %v32 = vxor.u32 %v22, %v30
  %v33 = vxor.u32 %v23, %v30
  %v34 = vxor.u32 %v24, %v30
  %v35 = vshrl.u32 %v31, 16
  %v36 = vshrl.u32 %v32, 16
  %v37 = vshrl.u32 %v33, 16
  %v38 = vshrl.u32 %v34, 16
  %v39 = vxor.u32 %v31, %v35
  %v40 = vxor.u32 %v32, %v36
  %v41 = vxor.u32 %v33, %v37
  %v42 = vxor.u32 %v34, %v38
  %v43 = vmul.u32 %v39, 2246822507
  %v44 = vmul.u32 %v40, 2246822507
  %v45 = vmul.u32 %v41, 2246822507
  %v46 = vmul.u32 %v42, 2246822507
  %v47 = vshrl.u32 %v43, 13
  %v48 = vshrl.u32 %v44, 13
  %v49 = vshrl.u32 %v45, 13
  %v50 = vshrl.u32 %v46, 13
  %v51 = vxor.u32 %v43, %v47
  %v52 = vxor.u32 %v44, %v48
  %v53 = vxor.u32 %v45, %v49
  %v54 = vxor.u32 %v46, %v50
  %v55 = vmul.u32 %v51, 3266489909
  %v56 = vmul.u32 %v52, 3266489909
  %v57 = vmul.u32 %v53, 3266489909
  %v58 = vmul.u32 %v54, 3266489909
  %v59 = vshrl.u32 %v55, 16
  %v60 = vshrl.u32 %v56, 16
  %v61 = vshrl.u32 %v57, 16
  %v62 = vshrl.u32 %v58, 16
  %v63 = vxor.u32 %v55, %v59
  %v64 = vxor.u32 %v56, %v60
  %v65 = vxor.u32 %v57, %v61
  %v66 = vxor.u32 %v58, %v62
  %v67 = vstv %s29
  %v68 = vxor.u32 %v63, %v67
  %v69 = vxor.u32 %v64, %v67
  %v70 = vxor.u32 %v65, %v67
  %v71 = vxor.u32 %v66, %v67
  %v72 = vshrl.u32 %v68, 16
  %v73 = vshrl.u32 %v69, 16
  %v74 = vshrl.u32 %v70, 16
  %v75 = vshrl.u32 %v71, 16
  %v76 = vxor.u32 %v68, %v72
  %v77 = vxor.u32 %v69, %v73
  %v78 = vxor.u32 %v70, %v74
  %v79 = vxor.u32 %v71, %v75
  %v80 = vmul.u32 %v76, 2246822507
  %v81 = vmul.u32 %v77, 2246822507
  %v82 = vmul.u32 %v78, 2246822507
  %v83 = vmul.u32 %v79, 2246822507
  %v84 = vshrl.u32 %v80, 13
  %v85 = vshrl.u32 %v81, 13
  %v86 = vshrl.u32 %v82, 13
  %v87 = vshrl.u32 %v83, 13
  %v88 = vxor.u32 %v80, %v84
  %v89 = vxor.u32 %v81, %v85
  %v90 = vxor.u32 %v82, %v86
  %v91 = vxor.u32 %v83, %v87
  %v92 = vmul.u32 %v88, 3266489909
  %v93 = vmul.u32 %v89, 3266489909
  %v94 = vmul.u32 %v90, 3266489909
  %v95 = vmul.u32 %v91, 3266489909
  %v96 = vshrl.u32 %v92, 16
  %v97 = vshrl.u32 %v93, 16
  %v98 = vshrl.u32 %v94, 16
  %v99 = vshrl.u32 %v95, 16
  %v100 = vxor.u32 %v92, %v96
  %v101 = vxor.u32 %v93, %v97
  %v102 = vxor.u32 %v94, %v98
  %v103 = vxor.u32 %v95, %v99
  %v104 = vshrl.u32 %v63, 8
  %v105 = vshrl.u32 %v64, 8
  %v106 = vshrl.u32 %v65, 8
  %v107 = vshrl.u32 %v66, 8
  %v108 = vcvt.s32.f32 %v104
  %v109 = vcvt.s32.f32 %v105
  %v110 = vcvt.s32.f32 %v106
  %v111 = vcvt.s32.f32 %v107
  %v112 = vadd.f32 %v108, 0.5
  %v113 = vadd.f32 %v109, 0.5
  %v114 = vadd.f32 %v110, 0.5
  %v115 = vadd.f32 %v111, 0.5
  %v116 = vmul.f32 %v112, 5.9604645e-08
  %v117 = vmul.f32 %v113, 5.9604645e-08
  %v118 = vmul.f32 %v114, 5.9604645e-08
  %v119 = vmul.f32 %v115, 5.9604645e-08
  %v120 = vshrl.u32 %v100, 8
  %v121 = vshrl.u32 %v101, 8
  %v122 = vshrl.u32 %v102, 8
  %v123 = vshrl.u32 %v103, 8
  %v124 = vcvt.s32.f32 %v120
  %v125 = vcvt.s32.f32 %v121
  %v126 = vcvt.s32.f32 %v122
  %v127 = vcvt.s32.f32 %v123
  %v128 = vmul.f32 %v124, 5.9604645e-08
  %v129 = vmul.f32 %v125, 5.9604645e-08
  %v130 = vmul.f32 %v126, 5.9604645e-08
  %v131 = vmul.f32 %v127, 5.9604645e-08
  %v132 = vlog2.pop %v116
  %v133 = vmul.f32 %v132, 0.6931472
  %v134 = vlog2.pop %v117
  %v135 = vmul.f32 %v134, 0.6931472
  %v136 = vlog2.pop %v118
  %v137 = vmul.f32 %v136, 0.6931472
  %v138 = vlog2.pop %v119
  %v139 = vmul.f32 %v138, 0.6931472
  %v140 = vmul.f32 %v133, -2.0
  %v141 = vmul.f32 %v135, -2.0
  %v142 = vmul.f32 %v137, -2.0
  %v143 = vmul.f32 %v139, -2.0
  %v144 = vrsqrt.pop %v140
  %v145 = vmul.f32 %v140, %v144
  %vm146 = vcmp.eq.f32.partialorder %v140, inf
  %v147 = vsel %vm146, %v140, %v145
  %vm148 = vcmp.eq.f32.partialorder %v140, 0.0
  %v149 = vand.u32 %v140, 2147483648
  %v150 = vsel %vm148, %v149, %v147
  %v151 = vrsqrt.pop %v141
  %v152 = vmul.f32 %v141, %v151
  %vm153 = vcmp.eq.f32.partialorder %v141, inf
  %v154 = vsel %vm153, %v141, %v152
  %vm155 = vcmp.eq.f32.partialorder %v141, 0.0
  %v156 = vand.u32 %v141, 2147483648
  %v157 = vsel %vm155, %v156, %v154
  %v158 = vrsqrt.pop %v142
  %v159 = vmul.f32 %v142, %v158
  %vm160 = vcmp.eq.f32.partialorder %v142, inf
  %v161 = vsel %vm160, %v142, %v159
  %vm162 = vcmp.eq.f32.partialorder %v142, 0.0
  %v163 = vand.u32 %v142, 2147483648
  %v164 = vsel %vm162, %v163, %v161
  %v165 = vrsqrt.pop %v143
  %v166 = vmul.f32 %v143, %v165
  %vm167 = vcmp.eq.f32.partialorder %v143, inf
  %v168 = vsel %vm167, %v143, %v166
  %vm169 = vcmp.eq.f32.partialorder %v143, 0.0
  %v170 = vand.u32 %v143, 2147483648
  %v171 = vsel %vm169, %v170, %v168
  %v172 = vmul.f32 %v128, 6.2831855
  %v173 = vmul.f32 %v129, 6.2831855
  %v174 = vmul.f32 %v130, 6.2831855
  %v175 = vmul.f32 %v131, 6.2831855
  %v176 = vand.u32 2147483647, %v172
  %vm177 = vcmp.le.f32.partialorder %v176, 0.7853982
  %vm178 = vcmp.lt.s32.totalorder %v172, 0
  %v179 = vand.u32 %v172, 2139095040
  %v180 = vshrl.u32 %v179, 23
  %v181 = vsub.s32 %v180, 127
  %v182 = vand.u32 2147483647, %v172
  %v183 = vand.u32 %v182, 8388607
  %v184 = vor.u32 %v183, 8388608
  %v185 = vsub.s32 0, %v184
  %v186 = vadd.s32 %v181, 1
  %vm187 = vcmp.gt.s32.totalorder %v186, 0
  %v188 = vsel %vm187, %v186, 0
  %v189 = vshrl.u32 %v188, 5
  %v190 = vand.u32 %v188, 31
  %v191 = vsub.s32 32, %v190
  %v192 = vshrl.u32 683565275, %v191
  %v193 = vshll.u32 683565275, %v190
  %v194 = vshrl.u32 2475754826, %v191
  %v195 = vor.u32 %v193, %v194
  %v196 = vshll.u32 2475754826, %v190
  %v197 = vshrl.u32 2131351028, %v191
  %v198 = vor.u32 %v196, %v197
  %v199 = vshll.u32 2131351028, %v190
  %v200 = vshrl.u32 2102212464, %v191
  %v201 = vor.u32 %v199, %v200
  %v202 = vshll.u32 2102212464, %v190
  %v203 = vshrl.u32 920167782, %v191
  %v204 = vor.u32 %v202, %v203
  %v205 = vshll.u32 920167782, %v190
  %v206 = vshrl.u32 1326507024, %v191
  %v207 = vor.u32 %v205, %v206
  %vm208 = vcmp.lt.s32.totalorder %v189, 1
  %vm209 = vcmp.lt.s32.totalorder %v189, 2
  %vm210 = vcmp.lt.s32.totalorder %v189, 3
  %vm211 = vcmp.lt.s32.totalorder %v189, 4
  %v212 = vsel %vm208, %v192, %v195
  %v213 = vsel %vm211, %v201, 2102212464
  %v214 = vsel %vm210, %v198, %v213
  %v215 = vsel %vm209, %v212, %v214
  %v216 = vsel %vm208, %v195, %v198
  %v217 = vsel %vm211, %v204, 920167782
  %v218 = vsel %vm210, %v201, %v217
  %v219 = vsel %vm209, %v216, %v218
  %v220 = vsel %vm208, %v198, %v201
  %v221 = vsel %vm211, %v207, 1326507024
  %v222 = vsel %vm210, %v204, %v221
  %v223 = vsel %vm209, %v220, %v222
  %v224 = vshll.u32 %v184, 8
  %v225 = vmul.u32.u64.compose %v224, %v223
  %v226 = vextract.low.u32 %v225
  %v227 = vextract.high.u32 %v225
  %v228 = vmul.u32.u64.compose %v224, %v219
  %v229 = vextract.low.u32 %v228
  %v230 = vextract.high.u32 %v228
  %v231 = vmul.u32 %v224, %v215
  %v232 = vadd.s32 %v227, %v229
  %vm233 = vc.u32 %v227, %v229
  %v234 = vadd.s32 %v230, 1
  %v235 = vsel %vm233, %v234, %v230
  %v236 = vadd.s32 %v231, %v235
  %v237 = vadd.s32 %v236, 536870912
  %v238 = vshrl.u32 %v237, 30
  %v239 = vshll.u32 %v238, 30
  %v240 = vsub.s32 %v236, %v239
  %vm241 = vcmp.lt.s32.totalorder %v240, 0
  %v242 = vsub.s32 0, %v240
  %v243 = vsel %vm241, %v242, %v240
  %v244 = vclz %v243
  %v245 = vsub.s32 %v244, 2
  %vm246 = vcmp.gt.s32.totalorder 0, %v245
  %v247 = vsel %vm246, 0, %v245
  %v248 = vsub.s32 32, %v247
  %v249 = vshll.u32 %v240, %v247
  %v250 = vshrl.u32 %v232, %v248
  %v251 = vor.u32 %v249, %v250
  %v252 = vsub.s32 4294967266, %v247
  %v253 = vadd.s32 %v252, 127
  %v254 = vshll.u32 %v253, 23
  %v255 = vor.u32 4788187, %v254
  %v256 = vand.u32 2147483647, %v255
  %v258 = vcvt.s32.f32 %v251
  %v259 = vmul.f32 %v258, %v256
  %v260 = vxor.u32 %v259, 2147483648
  %v261 = vsel %vm178, %v260, %v259
  %v262 = vsub.s32 4, %v238
  %v263 = vsel %vm178, %v262, %v238
  %v264 = vsel %vm177, %v172, %v261
  %v265 = vsel %vm177, 0, %v263
  %v266 = vcosq.f32.pop %v264
  %v267 = vsinq.f32.pop %v264
  %vm268 = vweird.f32 %v172
  %v269 = vand.u32 %v265, 3
  %vm270 = vcmp.lt.s32.totalorder %v269, 2
  %vm271 = vcmp.eq.s32.totalorder %v269, 0
  %v272 = vxor.u32 %v267, 2147483648
  %v273 = vsel %vm271, %v266, %v272
  %vm274 = vcmp.eq.s32.totalorder %v269, 2
  %v275 = vxor.u32 %v266, 2147483648
  %v276 = vsel %vm274, %v275, %v267
  %v277 = vsel %vm270, %v273, %v276
  %v278 = vsel %vm268, nan, %v277
  %v279 = vand.u32 2147483647, %v173
  %vm280 = vcmp.le.f32.partialorder %v279, 0.7853982
  %vm281 = vcmp.lt.s32.totalorder %v173, 0
  %v282 = vand.u32 %v173, 2139095040
  %v283 = vshrl.u32 %v282, 23
  %v284 = vsub.s32 %v283, 127
  %v285 = vand.u32 2147483647, %v173
  %v286 = vand.u32 %v285, 8388607
  %v287 = vor.u32 %v286, 8388608
  %v288 = vsub.s32 0, %v287
  %v289 = vadd.s32 %v284, 1
  %vm290 = vcmp.gt.s32.totalorder %v289, 0
  %v291 = vsel %vm290, %v289, 0
  %v292 = vshrl.u32 %v291, 5
  %v293 = vand.u32 %v291, 31
  %v294 = vsub.s32 32, %v293
  %v295 = vshrl.u32 683565275, %v294
  %v296 = vshll.u32 683565275, %v293
  %v297 = vshrl.u32 2475754826, %v294
  %v298 = vor.u32 %v296, %v297
  %v299 = vshll.u32 2475754826, %v293
  %v300 = vshrl.u32 2131351028, %v294
  %v301 = vor.u32 %v299, %v300
  %v302 = vshll.u32 2131351028, %v293
  %v303 = vshrl.u32 2102212464, %v294
  %v304 = vor.u32 %v302, %v303
  %v305 = vshll.u32 2102212464, %v293
  %v306 = vshrl.u32 920167782, %v294
  %v307 = vor.u32 %v305, %v306
  %v308 = vshll.u32 920167782, %v293
  %v309 = vshrl.u32 1326507024, %v294
  %v310 = vor.u32 %v308, %v309
  %vm311 = vcmp.lt.s32.totalorder %v292, 1
  %vm312 = vcmp.lt.s32.totalorder %v292, 2
  %vm313 = vcmp.lt.s32.totalorder %v292, 3
  %vm314 = vcmp.lt.s32.totalorder %v292, 4
  %v315 = vsel %vm311, %v295, %v298
  %v316 = vsel %vm314, %v304, 2102212464
  %v317 = vsel %vm313, %v301, %v316
  %v318 = vsel %vm312, %v315, %v317
  %v319 = vsel %vm311, %v298, %v301
  %v320 = vsel %vm314, %v307, 920167782
  %v321 = vsel %vm313, %v304, %v320
  %v322 = vsel %vm312, %v319, %v321
  %v323 = vsel %vm311, %v301, %v304
  %v324 = vsel %vm314, %v310, 1326507024
  %v325 = vsel %vm313, %v307, %v324
  %v326 = vsel %vm312, %v323, %v325
  %v327 = vshll.u32 %v287, 8
  %v328 = vmul.u32.u64.compose %v327, %v326
  %v329 = vextract.low.u32 %v328
  %v330 = vextract.high.u32 %v328
  %v331 = vmul.u32.u64.compose %v327, %v322
  %v332 = vextract.low.u32 %v331
  %v333 = vextract.high.u32 %v331
  %v334 = vmul.u32 %v327, %v318
  %v335 = vadd.s32 %v330, %v332
  %vm336 = vc.u32 %v330, %v332
  %v337 = vadd.s32 %v333, 1
  %v338 = vsel %vm336, %v337, %v333
  %v339 = vadd.s32 %v334, %v338
  %v340 = vadd.s32 %v339, 536870912
  %v341 = vshrl.u32 %v340, 30
  %v342 = vshll.u32 %v341, 30
  %v343 = vsub.s32 %v339, %v342
  %vm344 = vcmp.lt.s32.totalorder %v343, 0
  %v345 = vsub.s32 0, %v343
  %v346 = vsel %vm344, %v345, %v343
  %v347 = vclz %v346
  %v348 = vsub.s32 %v347, 2
  %vm349 = vcmp.gt.s32.totalorder 0, %v348
  %v350 = vsel %vm349, 0, %v348
  %v351 = vsub.s32 32, %v350
  %v352 = vshll.u32 %v343, %v350
  %v353 = vshrl.u32 %v335, %v351
  %v354 = vor.u32 %v352, %v353
  %v355 = vsub.s32 4294967266, %v350
  %v356 = vadd.s32 %v355, 127
  %v357 = vshll.u32 %v356, 23
  %v358 = vor.u32 4788187, %v357
  %v359 = vand.u32 2147483647, %v358
  %v361 = vcvt.s32.f32 %v354
  %v362 = vmul.f32 %v361, %v359
  %v363 = vxor.u32 %v362, 2147483648
  %v364 = vsel %vm281, %v363, %v362
  %v365 = vsub.s32 4, %v341
  %v366 = vsel %vm281, %v365, %v341
  %v367 = vsel %vm280, %v173, %v364
  %v368 = vsel %vm280, 0, %v366
  %v369 = vcosq.f32.pop %v367
  %v370 = vsinq.f32.pop %v367
  %vm371 = vweird.f32 %v173
  %v372 = vand.u32 %v368, 3
  %vm373 = vcmp.lt.s32.totalorder %v372, 2
  %vm374 = vcmp.eq.s32.totalorder %v372, 0
  %v375 = vxor.u32 %v370, 2147483648
  %v376 = vsel %vm374, %v369, %v375
  %vm377 = vcmp.eq.s32.totalorder %v372, 2
  %v378 = vxor.u32 %v369, 2147483648
  %v379 = vsel %vm377, %v378, %v370
  %v380 = vsel %vm373, %v376, %v379
  %v381 = vsel %vm371, nan, %v380
  %v382 = vand.u32 2147483647, %v174
  %vm383 = vcmp.le.f32.partialorder %v382, 0.7853982
  %vm384 = vcmp.lt.s32.totalorder %v174, 0
  %v385 = vand.u32 %v174, 2139095040
  %v386 = vshrl.u32 %v385, 23
  %v387 = vsub.s32 %v386, 127
  %v388 = vand.u32 2147483647, %v174
  %v389 = vand.u32 %v388, 8388607
  %v390 = vor.u32 %v389, 8388608
  %v391 = vsub.s32 0, %v390
  %v392 = vadd.s32 %v387, 1
  %vm393 = vcmp.gt.s32.totalorder %v392, 0
  %v394 = vsel %vm393, %v392, 0
  %v395 = vshrl.u32 %v394, 5
  %v396 = vand.u32 %v394, 31
  %v397 = vsub.s32 32, %v396
  %v398 = vshrl.u32 683565275, %v397
  %v399 = vshll.u32 683565275, %v396
  %v400 = vshrl.u32 2475754826, %v397
  %v401 = vor.u32 %v399, %v400
  %v402 = vshll.u32 2475754826, %v396
  %v403 = vshrl.u32 2131351028, %v397
  %v404 = vor.u32 %v402, %v403
  %v405 = vshll.u32 2131351028, %v396
  %v406 = vshrl.u32 2102212464, %v397
  %v407 = vor.u32 %v405, %v406
  %v408 = vshll.u32 2102212464, %v396
  %v409 = vshrl.u32 920167782, %v397
  %v410 = vor.u32 %v408, %v409
  %v411 = vshll.u32 920167782, %v396
  %v412 = vshrl.u32 1326507024, %v397
  %v413 = vor.u32 %v411, %v412
  %vm414 = vcmp.lt.s32.totalorder %v395, 1
  %vm415 = vcmp.lt.s32.totalorder %v395, 2
  %vm416 = vcmp.lt.s32.totalorder %v395, 3
  %vm417 = vcmp.lt.s32.totalorder %v395, 4
  %v418 = vsel %vm414, %v398, %v401
  %v419 = vsel %vm417, %v407, 2102212464
  %v420 = vsel %vm416, %v404, %v419
  %v421 = vsel %vm415, %v418, %v420
  %v422 = vsel %vm414, %v401, %v404
  %v423 = vsel %vm417, %v410, 920167782
  %v424 = vsel %vm416, %v407, %v423
  %v425 = vsel %vm415, %v422, %v424
  %v426 = vsel %vm414, %v404, %v407
  %v427 = vsel %vm417, %v413, 1326507024
  %v428 = vsel %vm416, %v410, %v427
  %v429 = vsel %vm415, %v426, %v428
  %v430 = vshll.u32 %v390, 8
  %v431 = vmul.u32.u64.compose %v430, %v429
  %v432 = vextract.low.u32 %v431
  %v433 = vextract.high.u32 %v431
  %v434 = vmul.u32.u64.compose %v430, %v425
  %v435 = vextract.low.u32 %v434
  %v436 = vextract.high.u32 %v434
  %v437 = vmul.u32 %v430, %v421
  %v438 = vadd.s32 %v433, %v435
  %vm439 = vc.u32 %v433, %v435
  %v440 = vadd.s32 %v436, 1
  %v441 = vsel %vm439, %v440, %v436
  %v442 = vadd.s32 %v437, %v441
  %v443 = vadd.s32 %v442, 536870912
  %v444 = vshrl.u32 %v443, 30
  %v445 = vshll.u32 %v444, 30
  %v446 = vsub.s32 %v442, %v445
  %vm447 = vcmp.lt.s32.totalorder %v446, 0
  %v448 = vsub.s32 0, %v446
  %v449 = vsel %vm447, %v448, %v446
  %v450 = vclz %v449
  %v451 = vsub.s32 %v450, 2
  %vm452 = vcmp.gt.s32.totalorder 0, %v451
  %v453 = vsel %vm452, 0, %v451
  %v454 = vsub.s32 32, %v453
  %v455 = vshll.u32 %v446, %v453
  %v456 = vshrl.u32 %v438, %v454
  %v457 = vor.u32 %v455, %v456
  %v458 = vsub.s32 4294967266, %v453
  %v459 = vadd.s32 %v458, 127
  %v460 = vshll.u32 %v459, 23
  %v461 = vor.u32 4788187, %v460
  %v462 = vand.u32 2147483647, %v461
  %v464 = vcvt.s32.f32 %v457
  %v465 = vmul.f32 %v464, %v462
  %v466 = vxor.u32 %v465, 2147483648
  %v467 = vsel %vm384, %v466, %v465
  %v468 = vsub.s32 4, %v444
  %v469 = vsel %vm384, %v468, %v444
  %v470 = vsel %vm383, %v174, %v467
  %v471 = vsel %vm383, 0, %v469
  %v472 = vcosq.f32.pop %v470
  %v473 = vsinq.f32.pop %v470
  %vm474 = vweird.f32 %v174
  %v475 = vand.u32 %v471, 3
  %vm476 = vcmp.lt.s32.totalorder %v475, 2
  %vm477 = vcmp.eq.s32.totalorder %v475, 0
  %v478 = vxor.u32 %v473, 2147483648
  %v479 = vsel %vm477, %v472, %v478
  %vm480 = vcmp.eq.s32.totalorder %v475, 2
  %v481 = vxor.u32 %v472, 2147483648
  %v482 = vsel %vm480, %v481, %v473
  %v483 = vsel %vm476, %v479, %v482
  %v484 = vsel %vm474, nan, %v483
  %v485 = vand.u32 2147483647, %v175
  %vm486 = vcmp.le.f32.partialorder %v485, 0.7853982
  %vm487 = vcmp.lt.s32.totalorder %v175, 0
  %v488 = vand.u32 %v175, 2139095040
  %v489 = vshrl.u32 %v488, 23
  %v490 = vsub.s32 %v489, 127
  %v491 = vand.u32 2147483647, %v175
  %v492 = vand.u32 %v491, 8388607
  %v493 = vor.u32 %v492, 8388608
  %v494 = vsub.s32 0, %v493
  %v495 = vadd.s32 %v490, 1
  %vm496 = vcmp.gt.s32.totalorder %v495, 0
  %v497 = vsel %vm496, %v495, 0
  %v498 = vshrl.u32 %v497, 5
  %v499 = vand.u32 %v497, 31
  %v500 = vsub.s32 32, %v499
  %v501 = vshrl.u32 683565275, %v500
  %v502 = vshll.u32 683565275, %v499
  %v503 = vshrl.u32 2475754826, %v500
  %v504 = vor.u32 %v502, %v503
  %v505 = vshll.u32 2475754826, %v499
  %v506 = vshrl.u32 2131351028, %v500
  %v507 = vor.u32 %v505, %v506
  %v508 = vshll.u32 2131351028, %v499
  %v509 = vshrl.u32 2102212464, %v500
  %v510 = vor.u32 %v508, %v509
  %v511 = vshll.u32 2102212464, %v499
  %v512 = vshrl.u32 920167782, %v500
  %v513 = vor.u32 %v511, %v512
  %v514 = vshll.u32 920167782, %v499
  %v515 = vshrl.u32 1326507024, %v500
  %v516 = vor.u32 %v514, %v515
  %vm517 = vcmp.lt.s32.totalorder %v498, 1
  %vm518 = vcmp.lt.s32.totalorder %v498, 2
  %vm519 = vcmp.lt.s32.totalorder %v498, 3
  %vm520 = vcmp.lt.s32.totalorder %v498, 4
  %v521 = vsel %vm517, %v501, %v504
  %v522 = vsel %vm520, %v510, 2102212464
  %v523 = vsel %vm519, %v507, %v522
  %v524 = vsel %vm518, %v521, %v523
  %v525 = vsel %vm517, %v504, %v507
  %v526 = vsel %vm520, %v513, 920167782
  %v527 = vsel %vm519, %v510, %v526
  %v528 = vsel %vm518, %v525, %v527
  %v529 = vsel %vm517, %v507, %v510
  %v530 = vsel %vm520, %v516, 1326507024
  %v531 = vsel %vm519, %v513, %v530
  %v532 = vsel %vm518, %v529, %v531
  %v533 = vshll.u32 %v493, 8
  %v534 = vmul.u32.u64.compose %v533, %v532
  %v535 = vextract.low.u32 %v534
  %v536 = vextract.high.u32 %v534
  %v537 = vmul.u32.u64.compose %v533, %v528
  %v538 = vextract.low.u32 %v537
  %v539 = vextract.high.u32 %v537
  %v540 = vmul.u32 %v533, %v524
  %v541 = vadd.s32 %v536, %v538
  %vm542 = vc.u32 %v536, %v538
  %v543 = vadd.s32 %v539, 1
  %v544 = vsel %vm542, %v543, %v539
  %v545 = vadd.s32 %v540, %v544
  %v546 = vadd.s32 %v545, 536870912
  %v547 = vshrl.u32 %v546, 30
  %v548 = vshll.u32 %v547, 30
  %v549 = vsub.s32 %v545, %v548
  %vm550 = vcmp.lt.s32.totalorder %v549, 0
  %v551 = vsub.s32 0, %v549
  %v552 = vsel %vm550, %v551, %v549
  %v553 = vclz %v552
  %v554 = vsub.s32 %v553, 2
  %vm555 = vcmp.gt.s32.totalorder 0, %v554
  %v556 = vsel %vm555, 0, %v554
  %v557 = vsub.s32 32, %v556
  %v558 = vshll.u32 %v549, %v556
  %v559 = vshrl.u32 %v541, %v557
  %v560 = vor.u32 %v558, %v559
  %v561 = vsub.s32 4294967266, %v556
  %v562 = vadd.s32 %v561, 127
  %v563 = vshll.u32 %v562, 23
  %v564 = vor.u32 4788187, %v563
  %v565 = vand.u32 2147483647, %v564
  %v567 = vcvt.s32.f32 %v560
  %v568 = vmul.f32 %v567, %v565
  %v569 = vxor.u32 %v568, 2147483648
  %v570 = vsel %vm487, %v569, %v568
  %v571 = vsub.s32 4, %v547
  %v572 = vsel %vm487, %v571, %v547
  %v573 = vsel %vm486, %v175, %v570
  %v574 = vsel %vm486, 0, %v572
  %v575 = vcosq.f32.pop %v573
  %v576 = vsinq.f32.pop %v573
  %vm577 = vweird.f32 %v175
  %v578 = vand.u32 %v574, 3
  %vm579 = vcmp.lt.s32.totalorder %v578, 2
  %vm580 = vcmp.eq.s32.totalorder %v578, 0
  %v581 = vxor.u32 %v576, 2147483648
  %v582 = vsel %vm580, %v575, %v581
  %vm583 = vcmp.eq.s32.totalorder %v578, 2
  %v584 = vxor.u32 %v575, 2147483648
  %v585 = vsel %vm583, %v584, %v576
  %v586 = vsel %vm579, %v582, %v585
  %v587 = vsel %vm577, nan, %v586
  %v588 = vmul.f32 %v150, %v278
  %v589 = vmul.f32 %v157, %v381
  %v590 = vmul.f32 %v164, %v484
  %v591 = vmul.f32 %v171, %v587
  %v592 = vld [vmem:[%s1] sm:$0xff]
  %v593 = vld [vmem:[%s1 + $0x8] sm:$0xff]
  %v594 = vmul.f32 %v588, 0.1
  %v595 = vmul.f32 %v589, 0.1
  %v596 = vmul.f32 %v590, 0.1
  %v597 = vmul.f32 %v591, 0.1
  %v598 = vadd.f32 %v594, 0.5
  %v599 = vadd.f32 %v595, 0.5
  %v600 = vadd.f32 %v596, 0.5
  %v601 = vadd.f32 %v597, 0.5
  %v606 = vcombine.low %v598, %v599
  %v607 = vcombine.low %v600, %v601
  %v610 = vadd.f32 %v592, %v606
  %v611 = vadd.f32 %v593, %v607
  %612 = vst [vmem:[%s2] sm:$0xff] %v610
  %613 = vst [vmem:[%s2 + $0x8] sm:$0xff] %v611
  // Predicated region
  $region6: #{_gaussian_noise_jit.1} parent=0 // pred_check
    _
  $region7: #{_gaussian_noise_jit.1} parent=0 // pred_check_branch
    %615 = sbr.rel (0) target = $region9
  $region8: #{_gaussian_noise_jit.1} parent=0 // pred_region
    _
  $region9: #{_gaussian_noise_jit.1} parent=0 // pred_fallthru
    _
  // Predicated region
  $region10: #{_gaussian_noise_jit.1} parent=0 // pred_check
    _
  $region11: #{_gaussian_noise_jit.1} parent=0 // pred_check_branch
    %617 = sbr.rel (0) target = $region13
  $region12: #{_gaussian_noise_jit.1} parent=0 // pred_region
    _
  $region13: #{_gaussian_noise_jit.1} parent=0 // pred_fallthru
    _

</llo_original>
